<compile_context>
chip_gen: v5e
topology: v5e:2x2
jax: 0.10.0
libtpu: 0.0.40
codegen_flags: <defaults>
</compile_context>

<pallas_src>
import numpy as np

import jax
import jax.numpy as jnp
from jax.experimental import pallas as pl
from jax.experimental.pallas import tpu as pltpu


# --------------------------------------------------------------------------
# Static (numpy) helpers: pooling / upsampling matrices.
# --------------------------------------------------------------------------
def _adaptive_pool_matrix(out_size, in_size):
    """Row-averaging matrix matching nn.AdaptiveAvgPool2d bin boundaries."""
    m = np.zeros((out_size, in_size), dtype=np.float32)
    for i in range(out_size):
        start = (i * in_size) // out_size
        end = -((-(i + 1) * in_size) // out_size)  # ceil((i+1)*in/out)
        m[i, start:end] = 1.0 / float(end - start)
    return m


def _bilinear_up_matrix(out_size, in_size):
    """Matrix matching F.interpolate(mode='bilinear', align_corners=True)."""
    m = np.zeros((out_size, in_size), dtype=np.float32)
    for i in range(out_size):
        if in_size == 1 or out_size == 1:
            src = 0.0
        else:
            src = i * (in_size - 1) / (out_size - 1)
        i0 = min(int(np.floor(src)), in_size - 1)
        i1 = min(i0 + 1, in_size - 1)
        frac = src - i0
        m[i, i0] += 1.0 - frac
        m[i, i1] += frac
    return m


# --------------------------------------------------------------------------
# Operand packing for the fused kernels.
# --------------------------------------------------------------------------
def _build_operands(params, pool_sizes, H, W):
    """Stack per-branch pool / conv / upsample operands.

    Returns (pT_bf16, W_bf16, nb_f32, uT_bf16, c_tot, S2P) where the pooled axis is
    zero-padded to a full 128-lane tile and `nb` fuses the BN shift with the
    block-diagonal branch mask (bias where valid, -1e30 elsewhere -> ReLU zeroes it).
    """
    HW = H * W
    s2_sum = sum(s * s for s in pool_sizes)
    S2P = max(128, -(-s2_sum // 128) * 128)           # pad pooled axis to 128 lanes

    pT = np.zeros((HW, S2P), np.float32)
    uT = np.zeros((S2P, HW), np.float32)
    col = 0
    for s in pool_sizes:
        mpool = np.kron(_adaptive_pool_matrix(s, H), _adaptive_pool_matrix(s, W))  # (s^2, HW)
        mup = np.kron(_bilinear_up_matrix(H, s), _bilinear_up_matrix(W, s))        # (HW, s^2)
        pT[:, col:col + s * s] = mpool.T
        uT[col:col + s * s, :] = mup.T
        col += s * s

    couts = [int(p["w_eff"].shape[0]) for p in params]
    c_tot = sum(couts)

    # relu(z + b) * mask == relu(z + nb) with nb = b on own-branch columns, -1e30 off.
    nb = np.full((c_tot, S2P), -1e30, np.float32)
    row, col = 0, 0
    for p, cout, s in zip(params, couts, pool_sizes):
        nb[row:row + cout, col:col + s * s] = np.asarray(p["b_eff"]).reshape(-1, 1)
        row += cout
        col += s * s

    w_all = jnp.concatenate([p["w_eff"] for p in params], axis=0).astype(jnp.bfloat16)
    return (jnp.asarray(pT, jnp.bfloat16), w_all, jnp.asarray(nb, jnp.float32),
            jnp.asarray(uT, jnp.bfloat16), c_tot, S2P)


def _pick_div_tile(total, max_tile, quantum):
    """Largest multiple of `quantum` <= max_tile that divides `total`; else full."""
    if total <= max_tile:
        return total
    t = (max_tile // quantum) * quantum
    while t >= quantum:
        if total % t == 0:
            return t
        t -= quantum
    return total


def _vmem_limit_bytes():
    """Generation-aware VMEM budget with ~25% headroom (v7x: 64 MiB/TC, v5e/v6e: 128 MiB)."""
    try:
        cap = int(pltpu.get_tpu_info().vmem_capacity_bytes)
        return max(32 * 1024 * 1024, (cap * 3) // 4)
    except Exception:
        return None  # fall back to the compiler default scoped limit


# --------------------------------------------------------------------------
# Kernels.
# --------------------------------------------------------------------------
def _make_pool_conv_kernel(num_c_tiles):
    def kernel(x_ref, pT_ref, w_ref, nb_ref, z_ref, acc_ref):
        # x_ref:   (1, c_tile, HW) bf16   one batch element, one C tile (channels-first)
        # pT_ref:  (HW, S2P)       bf16   stacked adaptive-pool matrices, transposed
        # w_ref:   (c_tot, c_tile) bf16   stacked 1x1-conv weights (BN scale folded)
        # nb_ref:  (c_tot, S2P)    f32    bias-or-neg-inf (fused BN shift + branch mask)
        # z_ref:   (1, c_tot, S2P) bf16   pooled-grid activations (ReLU'd), per batch elem
        # acc_ref: (c_tot, S2P)    f32    conv accumulator over the C-reduction axis
        c = pl.program_id(1)

        @pl.when(c == 0)
        def _init():
            acc_ref[...] = jnp.zeros_like(acc_ref)

        pooled = jnp.dot(x_ref[0], pT_ref[...], preferred_element_type=jnp.float32)
        acc_ref[...] += jnp.dot(w_ref[...], pooled.astype(jnp.bfloat16),
                                preferred_element_type=jnp.float32)

        @pl.when(c == num_c_tiles - 1)
        def _finalize():
            r = jnp.maximum(acc_ref[...] + nb_ref[...], 0.0)   # f32 epilogue
            z_ref[0] = r.astype(z_ref.dtype)

    return kernel


def _upsample_kernel(z_ref, uT_ref, o_ref):
    # z_ref: (1, co_tile, S2P) bf16; uT_ref: (S2P, hw_tile) bf16; o_ref: (1, co_tile, hw_tile)
    o_ref[0] = jnp.dot(z_ref[0], uT_ref[...],
                       preferred_element_type=jnp.float32).astype(o_ref.dtype)


# --------------------------------------------------------------------------
# Wrapper.
# --------------------------------------------------------------------------
def pyramid_pooling_module(x_nchw, params, pool_sizes):
    """Forward pass. x_nchw: (N, C, H, W) -> (N, C + Ctot, H, W)."""
    N, C, H, W = map(int, x_nchw.shape)
    HW = H * W

    pT, w_all, nb, uT, c_tot, S2P = _build_operands(params, pool_sizes, H, W)
    x_flat = x_nchw.reshape(N, C, HW).astype(jnp.bfloat16)   # halves the dominant HBM read

    vlim = _vmem_limit_bytes()

    # ---- Stage 1: pool (matmul) + 1x1 conv w/ folded BN + bias + ReLU -----------
    c_tile = _pick_div_tile(C, 512, 128)       # W's last dim => 128-multiple (or full C)
    num_c_tiles = C // c_tile

    z = pl.pallas_call(
        _make_pool_conv_kernel(num_c_tiles),
        out_shape=jax.ShapeDtypeStruct((N, c_tot, S2P), jnp.bfloat16),
        grid_spec=pltpu.PrefetchScalarGridSpec(
            num_scalar_prefetch=0,
            grid=(N, num_c_tiles),
            in_specs=[
                pl.BlockSpec((1, c_tile, HW), lambda n, c: (n, c, 0)),   # x tile
                pl.BlockSpec((HW, S2P), lambda n, c: (0, 0)),            # P^T (constant)
                pl.BlockSpec((c_tot, c_tile), lambda n, c: (0, c)),      # W tile (bf16)
                pl.BlockSpec((c_tot, S2P), lambda n, c: (0, 0)),         # bias/mask (constant)
            ],
            out_specs=pl.BlockSpec((1, c_tot, S2P), lambda n, c: (n, 0, 0)),
            scratch_shapes=[pltpu.VMEM((c_tot, S2P), jnp.float32)],
        ),
        compiler_params=pltpu.CompilerParams(
            dimension_semantics=("parallel", "arbitrary"),
            vmem_limit_bytes=vlim,
        ),
    )(x_flat, pT, w_all, nb)

    # ---- Stage 2: bilinear upsample (matmul), tiled over (n, c_tot, HW) ---------
    co_tile = _pick_div_tile(c_tot, 512, 8)
    hw_tile = HW if HW <= 1024 else 1024       # 128-multiple; ragged tail is masked
    n_co = c_tot // co_tile
    n_hw = -(-HW // hw_tile)

    up = pl.pallas_call(
        _upsample_kernel,
        out_shape=jax.ShapeDtypeStruct((N, c_tot, HW), x_nchw.dtype),
        grid_spec=pltpu.PrefetchScalarGridSpec(
            num_scalar_prefetch=0,
            grid=(N, n_co, n_hw),
            in_specs=[
                pl.BlockSpec((1, co_tile, S2P), lambda n, co, hw: (n, co, 0)),  # z tile
                pl.BlockSpec((S2P, hw_tile), lambda n, co, hw: (0, hw)),        # U^T cols
            ],
            out_specs=pl.BlockSpec((1, co_tile, hw_tile), lambda n, co, hw: (n, co, hw)),
        ),
        compiler_params=pltpu.CompilerParams(
            dimension_semantics=("parallel", "parallel", "parallel"),
            vmem_limit_bytes=vlim,
        ),
    )(z, uT)

    # Pass-through concat of x done by XLA (same HBM traffic, zero kernel VMEM cost).
    return jnp.concatenate([x_nchw, up.reshape(N, c_tot, H, W)], axis=1)


# --------------------------------------------------------------------------
# Parameters (BN folded into the 1x1 conv) and a pure-JAX f32 reference.
# --------------------------------------------------------------------------
def init_ppm_params(key, in_channels, pool_sizes, eps=1e-5):
    """Deterministic synthetic parameters; BN (inference) folded into the 1x1 conv."""
    out_channels = in_channels // len(pool_sizes)
    params = []
    for _ in pool_sizes:
        key, k_w, k_g, k_b, k_m, k_v = jax.random.split(key, 6)
        conv_w = 0.1 * jax.random.normal(k_w, (out_channels, in_channels), jnp.float32)
        gamma = jax.random.uniform(k_g, (out_channels,), jnp.float32, 0.5, 1.5)
        beta = 0.1 * jax.random.normal(k_b, (out_channels,), jnp.float32)
        r_mean = 0.1 * jax.random.normal(k_m, (out_channels,), jnp.float32)
        r_var = jax.random.uniform(k_v, (out_channels,), jnp.float32, 0.5, 1.5)
        scale = gamma / jnp.sqrt(r_var + eps)
        w_eff = conv_w * scale[:, None]           # (Cout, C)
        b_eff = beta - r_mean * scale             # (Cout,)
        params.append({"w_eff": w_eff, "b_eff": b_eff})
    return params


def _reference(x_nchw, params, pool_sizes):
    """Pure-JAX (f32) reference of the same math, for sanity checking the kernels."""
    N, C, H, W = x_nchw.shape
    HW = H * W
    x_flat = x_nchw.reshape(N, C, HW)
    outs = [x_nchw]
    for s, p in zip(pool_sizes, params):
        mpool = jnp.asarray(
            np.kron(_adaptive_pool_matrix(s, H), _adaptive_pool_matrix(s, W)))  # (s^2, HW)
        mup = jnp.asarray(
            np.kron(_bilinear_up_matrix(H, s), _bilinear_up_matrix(W, s)))      # (HW, s^2)
        pooled = jnp.einsum("nch,ph->ncp", x_flat, mpool)                       # (N, C, s^2)
        z = jnp.einsum("oc,ncp->nop", p["w_eff"], pooled) + p["b_eff"].reshape(1, -1, 1)
        r = jnp.maximum(z, 0.0)
        up = jnp.einsum("hp,nop->noh", mup, r)                                  # (N, Cout, HW)
        outs.append(up.reshape(N, -1, H, W))
    return jnp.concatenate(outs, axis=1)


if __name__ == "__main__":
    N, C, H, W = 2, 8, 16, 16
    pool_sizes = (1, 2, 3, 6)

    key = jax.random.PRNGKey(0)
    k_x, k_p = jax.random.split(key)
    x = jax.random.normal(k_x, (N, C, H, W), jnp.float32)
    params = init_ppm_params(k_p, C, pool_sizes)

    out = pyramid_pooling_module(x, params, pool_sizes)
    out = jax.block_until_ready(out)

    expected_channels = C + len(pool_sizes) * (C // len(pool_sizes))
    assert out.shape == (N, expected_channels, H, W), out.shape

    ref = jax.block_until_ready(_reference(x, params, pool_sizes))
    # bf16 MXU operands (f32 accumulation) -> relaxed tolerance vs the f32 reference.
    np.testing.assert_allclose(np.asarray(out), np.asarray(ref), rtol=2e-2, atol=2e-2)

    print("KERNEL_OK")
</pallas_src>

<mosaic_0001>
module attributes {stable_mosaic.version = 11 : i64} {
  func.func @kernel(%arg0: i32, %arg1: i32, %arg2: memref<1x8x256xbf16, #tpu.memory_space<vmem>>, %arg3: memref<256x128xbf16, #tpu.memory_space<vmem>>, %arg4: memref<8x8xbf16, #tpu.memory_space<vmem>>, %arg5: memref<8x128xf32, #tpu.memory_space<vmem>>, %arg6: memref<1x8x128xbf16, #tpu.memory_space<vmem>>, %arg7: memref<8x128xf32, #tpu.memory_space<vmem>>) attributes {dimension_semantics = [#tpu.dimension_semantics<parallel>, #tpu.dimension_semantics<arbitrary>], iteration_bounds = array<i64: 2, 1>, scalar_prefetch = 0 : i64, scratch_operands = 1 : i64, tpu.core_type = #tpu.core_type<tc>, window_params = [{transform_indices = @transform_0, window_bounds = array<i64: 1, 8, 256>}, {pipeline_mode = #tpu.pipeline_mode<synchronous>, transform_indices = @transform_1, window_bounds = array<i64: 256, 128>}, {transform_indices = @transform_2, window_bounds = array<i64: 8, 8>}, {pipeline_mode = #tpu.pipeline_mode<synchronous>, transform_indices = @transform_3, window_bounds = array<i64: 8, 128>}, {transform_indices = @transform_4, window_bounds = array<i64: 1, 8, 128>}]} {
    %c0_i32 = arith.constant 0 : i32
    %0 = arith.cmpi eq, %arg1, %c0_i32 : i32
    %1 = arith.extui %0 : i1 to i32
    %c0_i32_0 = arith.constant 0 : i32
    %2 = arith.cmpi ne, %1, %c0_i32_0 : i32
    scf.if %2 {
      %cst_14 = arith.constant 0.000000e+00 : f32
      %16 = vector.broadcast %cst_14 : f32 to vector<8x128xf32>
      %c0_15 = arith.constant 0 : index
      %c0_16 = arith.constant 0 : index
      %17 = vector.load %arg7[%c0_15, %c0_16] : memref<8x128xf32, #tpu.memory_space<vmem>>, vector<8x128xf32>
      tpu.vector_store %arg7[%c0_15, %c0_16], %16 {strides = array<i32>} : memref<8x128xf32, #tpu.memory_space<vmem>>, vector<8x128xf32>,
    } else {
    }
    %c0 = arith.constant 0 : index
    %c0_1 = arith.constant 0 : index
    %c0_2 = arith.constant 0 : index
    %3 = vector.load %arg2[%c0, %c0_1, %c0_2] : memref<1x8x256xbf16, #tpu.memory_space<vmem>>, vector<1x8x256xbf16>
    %4 = vector.shape_cast %3 : vector<1x8x256xbf16> to vector<8x256xbf16>
    %c0_3 = arith.constant 0 : index
    %c0_4 = arith.constant 0 : index
    %5 = vector.load %arg3[%c0_3, %c0_4] : memref<256x128xbf16, #tpu.memory_space<vmem>>, vector<256x128xbf16>
    %cst = arith.constant dense<0.000000e+00> : vector<8x128xf32>
    %6 = tpu.matmul %4, %5, %cst {dimension_numbers = #tpu.dot_dimension_numbers<[1], [0], [0], [1], [0, 0, 1, 1], [], []>} : vector<8x256xbf16>, vector<256x128xbf16>, vector<8x128xf32> -> vector<8x128xf32>
    %c0_5 = arith.constant 0 : index
    %c0_6 = arith.constant 0 : index
    %7 = vector.load %arg7[%c0_5, %c0_6] : memref<8x128xf32, #tpu.memory_space<vmem>>, vector<8x128xf32>
    %c0_7 = arith.constant 0 : index
    %c0_8 = arith.constant 0 : index
    %8 = vector.load %arg4[%c0_7, %c0_8] : memref<8x8xbf16, #tpu.memory_space<vmem>>, vector<8x8xbf16>
    %9 = arith.truncf %6 : vector<8x128xf32> to vector<8x128xbf16>
    %cst_9 = arith.constant dense<0.000000e+00> : vector<8x128xf32>
    %10 = tpu.matmul %8, %9, %cst_9 {dimension_numbers = #tpu.dot_dimension_numbers<[1], [0], [0], [1], [0, 0, 1, 1], [], []>} : vector<8x8xbf16>, vector<8x128xbf16>, vector<8x128xf32> -> vector<8x128xf32>
    %11 = arith.addf %7, %10 : vector<8x128xf32>
    %c0_10 = arith.constant 0 : index
    %c0_11 = arith.constant 0 : index
    %12 = vector.load %arg7[%c0_10, %c0_11] : memref<8x128xf32, #tpu.memory_space<vmem>>, vector<8x128xf32>
    tpu.vector_store %arg7[%c0_10, %c0_11], %11 {strides = array<i32>} : memref<8x128xf32, #tpu.memory_space<vmem>>, vector<8x128xf32>,
    %c0_i32_12 = arith.constant 0 : i32
    %13 = arith.cmpi eq, %arg1, %c0_i32_12 : i32
    %14 = arith.extui %13 : i1 to i32
    %c0_i32_13 = arith.constant 0 : i32
    %15 = arith.cmpi ne, %14, %c0_i32_13 : i32
    scf.if %15 {
      %c0_14 = arith.constant 0 : index
      %c0_15 = arith.constant 0 : index
      %16 = vector.load %arg7[%c0_14, %c0_15] : memref<8x128xf32, #tpu.memory_space<vmem>>, vector<8x128xf32>
      %c0_16 = arith.constant 0 : index
      %c0_17 = arith.constant 0 : index
      %17 = vector.load %arg5[%c0_16, %c0_17] : memref<8x128xf32, #tpu.memory_space<vmem>>, vector<8x128xf32>
      %18 = arith.addf %16, %17 : vector<8x128xf32>
      %cst_18 = arith.constant 0.000000e+00 : f32
      %19 = vector.broadcast %cst_18 : f32 to vector<8x128xf32>
      %20 = arith.maximumf %18, %19 : vector<8x128xf32>
      %21 = arith.truncf %20 : vector<8x128xf32> to vector<8x128xbf16>
      %c0_19 = arith.constant 0 : index
      %c0_20 = arith.constant 0 : index
      %c0_21 = arith.constant 0 : index
      %22 = vector.load %arg6[%c0_19, %c0_20, %c0_21] : memref<1x8x128xbf16, #tpu.memory_space<vmem>>, vector<1x8x128xbf16>
      %23 = vector.shape_cast %22 : vector<1x8x128xbf16> to vector<8x128xbf16>
      %24 = vector.shape_cast %21 : vector<8x128xbf16> to vector<1x8x128xbf16>
      tpu.vector_store %arg6[%c0_19, %c0_20, %c0_21], %24 {strides = array<i32>} : memref<1x8x128xbf16, #tpu.memory_space<vmem>>, vector<1x8x128xbf16>,
    } else {
    }
    return
  }
  func.func @transform_0(%arg0: i32, %arg1: i32) -> (i32, i32, i32) {
    %c0_i32 = arith.constant 0 : i32
    %c0_i32_0 = arith.constant 0 : i32
    return %arg0, %arg1, %c0_i32 : i32, i32, i32
  }
  func.func @transform_1(%arg0: i32, %arg1: i32) -> (i32, i32) {
    %c0_i32 = arith.constant 0 : i32
    %c0_i32_0 = arith.constant 0 : i32
    %c0_i32_1 = arith.constant 0 : i32
    return %c0_i32, %c0_i32_0 : i32, i32
  }
  func.func @transform_2(%arg0: i32, %arg1: i32) -> (i32, i32) {
    %c0_i32 = arith.constant 0 : i32
    %c0_i32_0 = arith.constant 0 : i32
    return %c0_i32, %arg1 : i32, i32
  }
  func.func @transform_3(%arg0: i32, %arg1: i32) -> (i32, i32) {
    %c0_i32 = arith.constant 0 : i32
    %c0_i32_0 = arith.constant 0 : i32
    %c0_i32_1 = arith.constant 0 : i32
    return %c0_i32, %c0_i32_0 : i32, i32
  }
  func.func @transform_4(%arg0: i32, %arg1: i32) -> (i32, i32, i32) {
    %c0_i32 = arith.constant 0 : i32
    %c0_i32_0 = arith.constant 0 : i32
    %c0_i32_1 = arith.constant 0 : i32
    return %arg0, %c0_i32, %c0_i32_0 : i32, i32, i32
  }
}

</mosaic_0001>

<llo_original>
// kernel: tpu_custom_call.1
$region0: #{tpu_custom_call.1}
  #allocation0 [shape = 'u32[]', space=smem, size = 0x4, offset = 0x4, fixed_abs, tag = 'smem constant byte address 0x4 - core index']
  #allocation1 [shape = 'u32[72,128]{1,0:T(1,128)}', space=vmem, size = 0x9000, scoped, tag = 'internal scratch']
  #allocation2 [shape = 'f32[8,128]{1,0:T(8,128)}', space=vmem, size = 0x1000, scoped, tag = 'scratch operand']
  %s0 = inlined_call_operand.hbm [shape: bf16[2,8,256], index: 0, kind: input, shape index: {}]
  %s1 = inlined_call_operand.hbm [shape: bf16[256,128], index: 1, kind: input, shape index: {}]
  %s2 = inlined_call_operand.hbm [shape: bf16[8,8], index: 2, kind: input, shape index: {}]
  %s3 = inlined_call_operand.hbm [shape: f32[8,128], index: 3, kind: input, shape index: {}]
  %s4 = inlined_call_operand.hbm [shape: bf16[2,8,128], index: 4, kind: output, shape index: {}]
  %s5 = sld [smem:[#allocation0]]
  $region73: #{tpu_custom_call.1} parent=0
    _
  %s7 = ssub.s32 1, %s5
  %s8 = scalar_select 0, %s7, %s5
  $region1: #{tpu_custom_call.1} parent=0
    #allocation3 [shape = 'u8[8192]{0}', space=vmem, size = 0x2000, scoped, tag = 'input window, operand 0']
    #allocation4 [shape = 's32[2]{0}', space=sflag, size = 0x8, scoped, tag = 'scoped memory for tpu_custom_call.1']
    #allocation5 [shape = 's32[2]{0}', space=sflag, size = 0x8, scoped, tag = 'scoped memory for tpu_custom_call.1']
    #allocation6 [shape = 'u8[65536]{0}', space=vmem, size = 0x10000, scoped, tag = 'input window, operand 1, single buffered']
    #allocation7 [shape = 's32[1]{0}', space=sflag, size = 0x4, scoped, tag = 'scoped memory for tpu_custom_call.1']
    #allocation8 [shape = 'u8[2048]{0}', space=vmem, size = 0x800, scoped, tag = 'input window, operand 2, single buffered']
    #allocation9 [shape = 'u8[4096]{0}', space=vmem, size = 0x1000, scoped, tag = 'input window, operand 3, single buffered']
    #allocation10 [shape = 's32[1]{0}', space=sflag, size = 0x4, scoped, tag = 'scoped memory for tpu_custom_call.1']
    #allocation11 [shape = 'u8[4096]{0}', space=vmem, size = 0x1000, scoped, tag = 'output window, operand 0']
    %9 = vsyncpa [#allocation4], 0
    %s10 = scalar_lea.sflag [#allocation4], 1
    %11 = vsyncpa %s10, 0
    %12 = vsyncpa [#allocation7], 0
    %13 = vsyncpa [#allocation10], 0
    %14 = vsyncpa [#allocation5], 0
    %s15 = scalar_lea.sflag [#allocation5], 1
    %16 = vsyncpa %s15, 0
    loop: start=0, step=1, limit=4
    $region2: #{tpu_custom_call.1} parent=1 // loop_pre_header
      _
    $region3: #{tpu_custom_call.1} parent=1 // loop_header
      %s18 = sphi 0, %s22
      %p19 = scmp.ge.s32.totalorder %s18, 4
      %s25 = sphi 0, %s37
      %s26 = sphi 0, %s33
      %s27 = sphi 0, %s25
      %s28 = sphi 0, %s26
      %s29 = sphi 0, %s27
      %s30 = sphi 0, %s28
      %s42 = sphi 0, %s44
      %s45 = sphi 0, %s42
      %s46 = sphi 0, %s45
      %s62 = sphi 0, %s46
      %s66 = sphi 0, %s66
      %s68 = sphi 0, %s66
      %s69 = sphi 0, %s68
      %s83 = sphi 0, %s69
      %s89 = sphi 0, %s91
      %s92 = sphi 0, %s89
      %s93 = sphi 0, %s92
      %s109 = sphi 0, %s93
      %s113 = sphi 0, %s113
      %s115 = sphi 0, %s113
      %s116 = sphi 0, %s115
      %s130 = sphi 0, %s116
      %s136 = sphi 0, %s138
      %s139 = sphi 0, %s136
      %s140 = sphi 0, %s139
      %s156 = sphi 0, %s140
    $region4: #{tpu_custom_call.1} parent=1 // loop_header_branch
      %21 = sbr.rel (%p19) target = $region8
    $region5: #{tpu_custom_call.1} parent=1 // loop_body
      %s23 = ssub.s32 %s18, 1
      %s24 = ssub.s32 %s18, 2
      %s31 = sadd.s32 1, %s26
      %p32 = scmp.ge.s32.totalorder %s31, 1
      %s33 = scalar_select %p32, 0, %s31
      %s34 = sadd.s32 1, %s25
      %s35 = scalar_select %p32, %s34, %s25
      %p36 = scmp.ge.s32.totalorder %s35, 2
      %s37 = scalar_select %p36, 0, %s35
      %s38 = ssub.s32 %s25, %s37
      %s39 = ssub.s32 %s26, %s33
      %s40 = sor.u32 %s38, %s39
      %p41 = scmp.eq.s32.totalorder %s40, 0
      %s43 = sadd.s32 %s42, 1
      %s44 = scalar_select %p41, %s42, %s43
      %p47 = pneg %p41
      %p48 = scmp.eq.s32.totalorder %s18, 1
      %p49 = por %p47, %p48
      %p50 = scmp.ne.s32.totalorder %s42, %s45
      %p51 = scmp.eq.s32.totalorder %s18, 0
      %p52 = por %p50, %p51
      %p53 = scmp.ne.s32.totalorder %s42, %s45
      %p54 = scmp.eq.s32.totalorder %s23, 1
      %p55 = por %p53, %p54
      %p56 = scmp.ne.s32.totalorder %s45, %s46
      %p57 = scmp.eq.s32.totalorder %s23, 0
      %p58 = por %p56, %p57
      %p59 = scmp.ne.s32.totalorder %s45, %s46
      %p60 = scmp.eq.s32.totalorder %s24, 1
      %p61 = por %p59, %p60
      %p63 = scmp.ne.s32.totalorder %s46, %s62
      %p64 = scmp.eq.s32.totalorder %s24, 0
      %p65 = por %p63, %p64
      %s67 = sadd.s32 %s66, 1
      %p70 = scmp.eq.s32.totalorder %s18, 1
      %p71 = scmp.ne.s32.totalorder %s66, %s68
      %p72 = scmp.eq.s32.totalorder %s18, 0
      %p73 = por %p71, %p72
      %p74 = scmp.ne.s32.totalorder %s66, %s68
      %p75 = scmp.eq.s32.totalorder %s23, 1
      %p76 = por %p74, %p75
      %p77 = scmp.ne.s32.totalorder %s68, %s69
      %p78 = scmp.eq.s32.totalorder %s23, 0
      %p79 = por %p77, %p78
      %p80 = scmp.ne.s32.totalorder %s68, %s69
      %p81 = scmp.eq.s32.totalorder %s24, 1
      %p82 = por %p80, %p81
      %p84 = scmp.ne.s32.totalorder %s69, %s83
      %p85 = scmp.eq.s32.totalorder %s24, 0
      %p86 = por %p84, %p85
      %s87 = ssub.s32 %s26, %s33
      %p88 = scmp.eq.s32.totalorder %s87, 0
      %s90 = sadd.s32 %s89, 1
      %s91 = scalar_select %p88, %s89, %s90
      %p94 = pneg %p88
      %p95 = scmp.eq.s32.totalorder %s18, 1
      %p96 = por %p94, %p95
      %p97 = scmp.ne.s32.totalorder %s89, %s92
      %p98 = scmp.eq.s32.totalorder %s18, 0
      %p99 = por %p97, %p98
      %p100 = scmp.ne.s32.totalorder %s89, %s92
      %p101 = scmp.eq.s32.totalorder %s23, 1
      %p102 = por %p100, %p101
      %p103 = scmp.ne.s32.totalorder %s92, %s93
      %p104 = scmp.eq.s32.totalorder %s23, 0
      %p105 = por %p103, %p104
      %p106 = scmp.ne.s32.totalorder %s92, %s93
      %p107 = scmp.eq.s32.totalorder %s24, 1
      %p108 = por %p106, %p107
      %p110 = scmp.ne.s32.totalorder %s93, %s109
      %p111 = scmp.eq.s32.totalorder %s24, 0
      %p112 = por %p110, %p111
      %s114 = sadd.s32 %s113, 1
      %p117 = scmp.eq.s32.totalorder %s18, 1
      %p118 = scmp.ne.s32.totalorder %s113, %s115
      %p119 = scmp.eq.s32.totalorder %s18, 0
      %p120 = por %p118, %p119
      %p121 = scmp.ne.s32.totalorder %s113, %s115
      %p122 = scmp.eq.s32.totalorder %s23, 1
      %p123 = por %p121, %p122
      %p124 = scmp.ne.s32.totalorder %s115, %s116
      %p125 = scmp.eq.s32.totalorder %s23, 0
      %p126 = por %p124, %p125
      %p127 = scmp.ne.s32.totalorder %s115, %s116
      %p128 = scmp.eq.s32.totalorder %s24, 1
      %p129 = por %p127, %p128
      %p131 = scmp.ne.s32.totalorder %s116, %s130
      %p132 = scmp.eq.s32.totalorder %s24, 0
      %p133 = por %p131, %p132
      %s134 = ssub.s32 %s25, %s37
      %p135 = scmp.eq.s32.totalorder %s134, 0
      %s137 = sadd.s32 %s136, 1
      %s138 = scalar_select %p135, %s136, %s137
      %p141 = pneg %p135
      %p142 = scmp.eq.s32.totalorder %s18, 1
      %p143 = por %p141, %p142
      %p144 = scmp.ne.s32.totalorder %s136, %s139
      %p145 = scmp.eq.s32.totalorder %s18, 0
      %p146 = por %p144, %p145
      %p147 = scmp.ne.s32.totalorder %s136, %s139
      %p148 = scmp.eq.s32.totalorder %s23, 1
      %p149 = por %p147, %p148
      %p150 = scmp.ne.s32.totalorder %s139, %s140
      %p151 = scmp.eq.s32.totalorder %s23, 0
      %p152 = por %p150, %p151
      %p153 = scmp.ne.s32.totalorder %s139, %s140
      %p154 = scmp.eq.s32.totalorder %s24, 1
      %p155 = por %p153, %p154
      %p157 = scmp.ne.s32.totalorder %s140, %s156
      %p158 = scmp.eq.s32.totalorder %s24, 0
      %p159 = por %p157, %p158
      %p160 = scmp.le.s32.totalorder 1, %s18
      %p161 = scmp.lt.s32.totalorder %s18, 3
      %p162 = pnand %p160, %p161
      %p163 = pneg %p162
      // Predicated region
      $region9: #{tpu_custom_call.1} parent=5 // pred_check
        _
      $region10: #{tpu_custom_call.1} parent=5 // pred_check_branch
        %165 = sbr.rel (%p162) target = $region12
      $region11: #{tpu_custom_call.1} parent=5 // pred_region
        %s166 = ssub.s32 %s18, 1
        // Predicated region
        $region13: #{tpu_custom_call.1} parent=11 // pred_check
          %p167 = pneg %p79
        $region14: #{tpu_custom_call.1} parent=11 // pred_check_branch
          %169 = sbr.rel (%p167) target = $region16
        $region15: #{tpu_custom_call.1} parent=11 // pred_region
          %171 = vsyncadd [#allocation7], 0
          %s172 = sshll.u32 %s1, 4
          %s173 = int_to_ptr.hbm [resolvable:$true] %s172
          %s174 = sshll.u32 [#allocation6], 4
          %s175 = int_to_ptr.vmem [resolvable:$true] %s174
          %180 = dma.hbm_to_vmem [thread:$0]  %s173, 2048, %s175, [#allocation7], 64, 64, 4
        $region16: #{tpu_custom_call.1} parent=11 // pred_fallthru
          _
        // Predicated region
        $region17: #{tpu_custom_call.1} parent=11 // pred_check
          %p181 = pneg %p105
        $region18: #{tpu_custom_call.1} parent=11 // pred_check_branch
          %183 = sbr.rel (%p181) target = $region20
        $region19: #{tpu_custom_call.1} parent=11 // pred_region
          %185 = vsyncadd [#allocation7], 0
          %s186 = smul.addr %s28, 4
          %s187 = scalar_lea.hbm %s2, %s186
          %s189 = sshll.u32 %s187, 4
          %s190 = int_to_ptr.hbm [resolvable:$true] %s189
          %s191 = sshll.u32 [#allocation8], 4
          %s192 = int_to_ptr.vmem [resolvable:$true] %s191
          %194 = dma.hbm_to_vmem [thread:$0]  %s190, 64, %s192, [#allocation7]
        $region20: #{tpu_custom_call.1} parent=11 // pred_fallthru
          _
        // Predicated region
        $region21: #{tpu_custom_call.1} parent=11 // pred_check
          %p195 = pneg %p126
        $region22: #{tpu_custom_call.1} parent=11 // pred_check_branch
          %197 = sbr.rel (%p195) target = $region24
        $region23: #{tpu_custom_call.1} parent=11 // pred_region
          %199 = vsyncadd [#allocation10], 0
          %s201 = sshll.u32 %s3, 4
          %s202 = int_to_ptr.hbm [resolvable:$true] %s201
          %s203 = sshll.u32 [#allocation9], 4
          %s204 = int_to_ptr.vmem [resolvable:$true] %s203
          %206 = dma.hbm_to_vmem [thread:$0]  %s202, 128, %s204, [#allocation10]
        $region24: #{tpu_custom_call.1} parent=11 // pred_fallthru
          _
      $region12: #{tpu_custom_call.1} parent=5 // pred_fallthru
        _
      %p207 = scmp.lt.s32.totalorder %s18, 2
      // Predicated region
      $region25: #{tpu_custom_call.1} parent=5 // pred_check
        %p208 = pneg %p207
      $region26: #{tpu_custom_call.1} parent=5 // pred_check_branch
        %210 = sbr.rel (%p208) target = $region28
      $region27: #{tpu_custom_call.1} parent=5 // pred_region
        // Predicated region
        $region29: #{tpu_custom_call.1} parent=27 // pred_check
          %p211 = pneg %p52
        $region30: #{tpu_custom_call.1} parent=27 // pred_check_branch
          %213 = sbr.rel (%p211) target = $region32
        $region31: #{tpu_custom_call.1} parent=27 // pred_region
          %s214 = sand.u32 %s42, 1
          %s215 = scalar_lea.sflag [#allocation4], %s214
          %s216 = sand.u32 %s42, 1
          %s217 = smul.addr %s216, 8
          %s218 = scalar_lea.vmem [#allocation3], %s217
          %220 = vsyncadd %s215, 0
          %s221 = smul.addr %s26, 2
          %s222 = smul.addr %s25, 2
          %s223 = sadd.s32 %s221, %s222
          %s224 = smul.addr %s223, 4
          %s225 = scalar_lea.hbm %s0, %s224
          %s227 = sshll.u32 %s225, 4
          %s228 = int_to_ptr.hbm [resolvable:$true] %s227
          %s229 = sshll.u32 %s218, 4
          %s230 = int_to_ptr.vmem [resolvable:$true] %s229
          %232 = dma.hbm_to_vmem [thread:$0]  %s228, 128, %s230, %s215
        $region32: #{tpu_custom_call.1} parent=27 // pred_fallthru
          _
      $region28: #{tpu_custom_call.1} parent=5 // pred_fallthru
        _
      %p233 = scmp.le.s32.totalorder 1, %s18
      %p234 = scmp.lt.s32.totalorder %s18, 3
      %p235 = pnand %p233, %p234
      %p236 = pneg %p235
      // Predicated region
      $region33: #{tpu_custom_call.1} parent=5 // pred_check
        _
      $region34: #{tpu_custom_call.1} parent=5 // pred_check_branch
        %238 = sbr.rel (%p235) target = $region36
      $region35: #{tpu_custom_call.1} parent=5 // pred_region
        %s239 = ssub.s32 %s18, 1
        %s240 = sand.u32 %s45, 1
        %s241 = scalar_lea.sflag [#allocation4], %s240
        %s242 = sand.u32 %s45, 1
        %s243 = smul.addr %s242, 8
        %s244 = scalar_lea.vmem [#allocation3], %s243
        // Predicated region
        $region37: #{tpu_custom_call.1} parent=35 // pred_check
          %p245 = pneg %p58
        $region38: #{tpu_custom_call.1} parent=35 // pred_check_branch
          %247 = sbr.rel (%p245) target = $region40
        $region39: #{tpu_custom_call.1} parent=35 // pred_region
          %249 = dma.done %s241, 128
        $region40: #{tpu_custom_call.1} parent=35 // pred_fallthru
          _
        // Predicated region
        $region41: #{tpu_custom_call.1} parent=35 // pred_check
          %p250 = pneg %p79
        $region42: #{tpu_custom_call.1} parent=35 // pred_check_branch
          %252 = sbr.rel (%p250) target = $region44
        $region43: #{tpu_custom_call.1} parent=35 // pred_region
          %254 = dma.done [#allocation7], 2048
        $region44: #{tpu_custom_call.1} parent=35 // pred_fallthru
          _
        // Predicated region
        $region45: #{tpu_custom_call.1} parent=35 // pred_check
          %p255 = pneg %p105
        $region46: #{tpu_custom_call.1} parent=35 // pred_check_branch
          %257 = sbr.rel (%p255) target = $region48
        $region47: #{tpu_custom_call.1} parent=35 // pred_region
          %259 = dma.done [#allocation7], 64
        $region48: #{tpu_custom_call.1} parent=35 // pred_fallthru
          _
        // Predicated region
        $region49: #{tpu_custom_call.1} parent=35 // pred_check
          %p260 = pneg %p126
        $region50: #{tpu_custom_call.1} parent=35 // pred_check_branch
          %262 = sbr.rel (%p260) target = $region52
        $region51: #{tpu_custom_call.1} parent=35 // pred_region
          %264 = dma.done [#allocation10], 128
        $region52: #{tpu_custom_call.1} parent=35 // pred_fallthru
          _
        %s265 = sand.u32 %s45, 1
        %s266 = scalar_lea.sflag [#allocation4], %s265
        %s267 = sand.u32 %s45, 1
        %s268 = smul.addr %s267, 8
        %s269 = scalar_lea.vmem [#allocation3], %s268
        %p270 = pneg %p58
        %p271 = pneg %p55
        %p272 = pneg %p79
        %p273 = pneg %p76
        %p274 = pneg %p105
        %p275 = pneg %p102
        %p276 = pneg %p126
        %p277 = pneg %p123
        %p278 = pneg %p152
        %p279 = pneg %p149
        %s280 = sand.u32 %s139, 1
        %s281 = scalar_lea.sflag [#allocation5], %s280
        %s282 = sand.u32 %s139, 1
        %s283 = smul.addr %s282, 4
        %s284 = scalar_lea.vmem [#allocation11], %s283
        %p286 = scmp.eq.s32.totalorder %s28, 0
        // Predicated region
        $region53: #{tpu_custom_call.1} parent=35 // pred_check
          %p287 = pneg %p286
        $region54: #{tpu_custom_call.1} parent=35 // pred_check_branch
          %289 = sbr.rel (%p287) target = $region56
        $region55: #{tpu_custom_call.1} parent=35 // pred_region
          %290 = vst [vmem:[#allocation2] sm:$0xff] 0.0
        $region56: #{tpu_custom_call.1} parent=35 // pred_fallthru
          _
        %v291 = vld [vmem:[%s244] sm:$0xff]
        %v292 = vld [vmem:[#allocation6] sm:$0xf]
        %v293 = vld [vmem:[#allocation6 + $0x4] sm:$0xf]
        %v294 = vld [vmem:[#allocation6 + $0x8] sm:$0xf]
        %v295 = vld [vmem:[#allocation6 + $0xc] sm:$0xf]
        %v296 = vld [vmem:[#allocation6 + $0x10] sm:$0xf]
        %v297 = vld [vmem:[#allocation6 + $0x14] sm:$0xf]
        %v298 = vld [vmem:[#allocation6 + $0x18] sm:$0xf]
        %v299 = vld [vmem:[#allocation6 + $0x1c] sm:$0xf]
        %v300 = vld [vmem:[#allocation6 + $0x20] sm:$0xf]
        %v301 = vld [vmem:[#allocation6 + $0x24] sm:$0xf]
        %v302 = vld [vmem:[#allocation6 + $0x28] sm:$0xf]
        %v303 = vld [vmem:[#allocation6 + $0x2c] sm:$0xf]
        %v304 = vld [vmem:[#allocation6 + $0x30] sm:$0xf]
        %v305 = vld [vmem:[#allocation6 + $0x34] sm:$0xf]
        %v306 = vld [vmem:[#allocation6 + $0x38] sm:$0xf]
        %v307 = vld [vmem:[#allocation6 + $0x3c] sm:$0xf]
        %v308 = vld [vmem:[#allocation6 + $0x40] sm:$0xf]
        %v309 = vld [vmem:[#allocation6 + $0x44] sm:$0xf]
        %v310 = vld [vmem:[#allocation6 + $0x48] sm:$0xf]
        %v311 = vld [vmem:[#allocation6 + $0x4c] sm:$0xf]
        %v312 = vld [vmem:[#allocation6 + $0x50] sm:$0xf]
        %v313 = vld [vmem:[#allocation6 + $0x54] sm:$0xf]
        %v314 = vld [vmem:[#allocation6 + $0x58] sm:$0xf]
        %v315 = vld [vmem:[#allocation6 + $0x5c] sm:$0xf]
        %v316 = vld [vmem:[#allocation6 + $0x60] sm:$0xf]
        %v317 = vld [vmem:[#allocation6 + $0x64] sm:$0xf]
        %v318 = vld [vmem:[#allocation6 + $0x68] sm:$0xf]
        %v319 = vld [vmem:[#allocation6 + $0x6c] sm:$0xf]
        %v320 = vld [vmem:[#allocation6 + $0x70] sm:$0xf]
        %v321 = vld [vmem:[#allocation6 + $0x74] sm:$0xf]
        %v322 = vld [vmem:[#allocation6 + $0x78] sm:$0xf]
        %v323 = vld [vmem:[#allocation6 + $0x7c] sm:$0xf]
        %v325 = vunpack.c.l.b16 %v291
        %v326 = vunpack.c.h.b16 %v291
        %v327 = vpack.c.b16 %v325, %v325
        %v328 = vpack.c.b16 %v326, %v326
        %v363 = vunpack.c.l.b16 %v292
        %v364 = vunpack.c.l.b16 %v293
        %v365 = vunpack.c.l.b16 %v294
        %v366 = vunpack.c.l.b16 %v295
        %v367 = vunpack.c.l.b16 %v296
        %v368 = vunpack.c.l.b16 %v297
        %v369 = vunpack.c.l.b16 %v298
        %v370 = vunpack.c.l.b16 %v299
        %v371 = vunpack.c.l.b16 %v300
        %v372 = vunpack.c.l.b16 %v301
        %v373 = vunpack.c.l.b16 %v302
        %v374 = vunpack.c.l.b16 %v303
        %v375 = vunpack.c.l.b16 %v304
        %v376 = vunpack.c.l.b16 %v305
        %v377 = vunpack.c.l.b16 %v306
        %v378 = vunpack.c.l.b16 %v307
        %v379 = vunpack.c.l.b16 %v308
        %v380 = vunpack.c.l.b16 %v309
        %v381 = vunpack.c.l.b16 %v310
        %v382 = vunpack.c.l.b16 %v311
        %v383 = vunpack.c.l.b16 %v312
        %v384 = vunpack.c.l.b16 %v313
        %v385 = vunpack.c.l.b16 %v314
        %v386 = vunpack.c.l.b16 %v315
        %v387 = vunpack.c.l.b16 %v316
        %v388 = vunpack.c.l.b16 %v317
        %v389 = vunpack.c.l.b16 %v318
        %v390 = vunpack.c.l.b16 %v319
        %v391 = vunpack.c.l.b16 %v320
        %v392 = vunpack.c.l.b16 %v321
        %v393 = vunpack.c.l.b16 %v322
        %v394 = vunpack.c.l.b16 %v323
        %v395 = vpack.c.b16 %v364, %v363
        %v396 = vpack.c.b16 %v366, %v365
        %v397 = vpack.c.b16 %v368, %v367
        %v398 = vpack.c.b16 %v370, %v369
        %v399 = vpack.c.b16 %v372, %v371
        %v400 = vpack.c.b16 %v374, %v373
        %v401 = vpack.c.b16 %v376, %v375
        %v402 = vpack.c.b16 %v378, %v377
        %v403 = vpack.c.b16 %v380, %v379
        %v404 = vpack.c.b16 %v382, %v381
        %v405 = vpack.c.b16 %v384, %v383
        %v406 = vpack.c.b16 %v386, %v385
        %v407 = vpack.c.b16 %v388, %v387
        %v408 = vpack.c.b16 %v390, %v389
        %v409 = vpack.c.b16 %v392, %v391
        %v410 = vpack.c.b16 %v394, %v393
        %427 = vmatpush.bf16.msra.mxu0 %v402
        %428 = vmatpush.bf16.msra.mxu0 %v401
        %429 = vmatpush.bf16.msra.mxu0 %v400
        %430 = vmatpush.bf16.msra.mxu0 %v399
        %431 = vmatpush.bf16.msra.mxu0 %v398
        %432 = vmatpush.bf16.msra.mxu0 %v397
        %433 = vmatpush.bf16.msra.mxu0 %v396
        %434 = vmatpush.bf16.msra.mxu0 %v395
        %435 = vmatmul.bf16.gmra.mxu0 %v327
        %v436 = vpop.f32.mrf.mxu0
        %v437 = vadd.f32 0.0, %v436
        %v438 = vpop.f32.mrf.mxu0
        %439 = vdwg.mxu0
        %440 = vmatpush.bf16.msra.mxu0 %v410
        %441 = vmatpush.bf16.msra.mxu0 %v409
        %442 = vmatpush.bf16.msra.mxu0 %v408
        %443 = vmatpush.bf16.msra.mxu0 %v407
        %444 = vmatpush.bf16.msra.mxu0 %v406
        %445 = vmatpush.bf16.msra.mxu0 %v405
        %446 = vmatpush.bf16.msra.mxu0 %v404
        %447 = vmatpush.bf16.msra.mxu0 %v403
        %448 = vmatmul.bf16.gmra.mxu0 %v328
        %v449 = vpop.f32.mrf.mxu0
        %v450 = vadd.f32 %v437, %v449
        %v451 = vpop.f32.mrf.mxu0
        %452 = vdwg.mxu0
        %v453 = vld [vmem:[#allocation2] sm:$0xff]
        %v454 = vld [vmem:[#allocation8] sm:$0xf]
        %v455 = vpack.c.bf16 %v450, %v450
        %vm456 = vcmask 64512
        %v458 = vsel %vm456, %v454, 0
        %vm460 = vcmask 1043456
        %v462 = vsel %vm460, %v455, 0
        %464 = vmatpush.bf16.msra.mxu0 0
        %465 = vmatpush.bf16.msra.mxu0 0
        %466 = vmatpush.bf16.msra.mxu0 0
        %467 = vmatpush.bf16.msra.mxu0 0
        %468 = vmatpush.bf16.msra.mxu0 0
        %469 = vmatpush.bf16.msra.mxu0 0
        %470 = vmatpush.bf16.msra.mxu0 0
        %471 = vmatpush.bf16.msra.mxu0 %v462
        %472 = vmatmul.bf16.gmra.mxu0 %v458
        %v473 = vpop.f32.mrf.mxu0
        %v474 = vadd.f32 0.0, %v473
        %v475 = vpop.f32.mrf.mxu0
        %476 = vdwg.mxu0
        %v477 = vadd.f32 %v453, %v474
        %478 = vst [vmem:[#allocation2] sm:$0xff] %v477
        // Predicated region
        $region57: #{tpu_custom_call.1} parent=35 // pred_check
          %p479 = pneg %p286
        $region58: #{tpu_custom_call.1} parent=35 // pred_check_branch
          %481 = sbr.rel (%p479) target = $region60
        $region59: #{tpu_custom_call.1} parent=35 // pred_region
          %v482 = vld [vmem:[#allocation2] sm:$0xff]
          %v483 = vld [vmem:[#allocation9] sm:$0xff]
          %v484 = vadd.f32 %v482, %v483
          %v485 = vmax.f32 %v484, 0.0
          %v486 = vpack.c.bf16 %v485, %v485
          %487 = vst [vmem:[%s284] sm:$0xf] %v486
        $region60: #{tpu_custom_call.1} parent=35 // pred_fallthru
          _
        %s488 = sand.u32 %s139, 1
        %s489 = scalar_lea.sflag [#allocation5], %s488
        %s490 = sand.u32 %s139, 1
        %s491 = smul.addr %s490, 4
        %s492 = scalar_lea.vmem [#allocation11], %s491
        // Predicated region
        $region61: #{tpu_custom_call.1} parent=35 // pred_check
          %p493 = pneg %p149
        $region62: #{tpu_custom_call.1} parent=35 // pred_check_branch
          %495 = sbr.rel (%p493) target = $region64
        $region63: #{tpu_custom_call.1} parent=35 // pred_region
          %497 = vsyncadd %s489, 0
          %s498 = smul.addr %s27, 4
          %s499 = scalar_lea.hbm %s4, %s498
          %s501 = sshll.u32 %s492, 4
          %s502 = int_to_ptr.vmem [resolvable:$true] %s501
          %s503 = sshll.u32 %s499, 4
          %s504 = int_to_ptr.hbm [resolvable:$true] %s503
          %506 = dma.vmem_to_hbm [thread:$0]  %s502, 64, %s504, %s489
        $region64: #{tpu_custom_call.1} parent=35 // pred_fallthru
          _
      $region36: #{tpu_custom_call.1} parent=5 // pred_fallthru
        _
      %p507 = scmp.le.s32.totalorder 2, %s18
      // Predicated region
      $region65: #{tpu_custom_call.1} parent=5 // pred_check
        %p508 = pneg %p507
      $region66: #{tpu_custom_call.1} parent=5 // pred_check_branch
        %510 = sbr.rel (%p508) target = $region68
      $region67: #{tpu_custom_call.1} parent=5 // pred_region
        %s511 = ssub.s32 %s18, 2
        // Predicated region
        $region69: #{tpu_custom_call.1} parent=67 // pred_check
          %p512 = pneg %p155
        $region70: #{tpu_custom_call.1} parent=67 // pred_check_branch
          %514 = sbr.rel (%p512) target = $region72
        $region71: #{tpu_custom_call.1} parent=67 // pred_region
          %s515 = sand.u32 %s140, 1
          %s516 = scalar_lea.sflag [#allocation5], %s515
          %s517 = sand.u32 %s140, 1
          %s518 = smul.addr %s517, 4
          %s519 = scalar_lea.vmem [#allocation11], %s518
          %521 = dma.done %s516, 64
        $region72: #{tpu_custom_call.1} parent=67 // pred_fallthru
          _
      $region68: #{tpu_custom_call.1} parent=5 // pred_fallthru
        _
    $region6: #{tpu_custom_call.1} parent=1 // loop_footer
      %s22 = sadd.s32 1, %s18
    $region7: #{tpu_custom_call.1} parent=1 // loop_footer_branch
      %17 = sbr.rel target = $region3
    $region8: #{tpu_custom_call.1} parent=1 // loop_exit
      _
    %522 = vsyncpa [#allocation4], 1
    %s523 = scalar_lea.sflag [#allocation4], 1
    %524 = vsyncpa %s523, 1
    %525 = vsyncpa [#allocation7], 1
    %526 = vsyncpa [#allocation10], 1
    %527 = vsyncpa [#allocation5], 1
    %s528 = scalar_lea.sflag [#allocation5], 1
    %529 = vsyncpa %s528, 1

</llo_original>
